<compile_context>
chip_gen: v6e
topology: v6e:2x2x1
jax: 0.10.0
libtpu: 0.0.40
codegen_flags: <defaults>
</compile_context>

<pallas_src>
from functools import partial

import jax
import jax.numpy as jnp
from jax import lax
from jax.experimental import pallas as pl
from jax.experimental.pallas import tpu as pltpu


_TARGET_STEP_BYTES = 8 * 1024 * 1024   # per-grid-step HBM traffic (review: 8-12 MiB)
_SLAB_F32_BYTES = 2 * 1024 * 1024      # cap on one f32 temp slab inside the kernel


def _plan_tiles(T, C, itemsize):
    """Returns (tT, n_t, masked): T-tile rows, #tiles, whether edge masking is needed."""
    align = max(8, 32 // max(itemsize, 1))                 # 8 rows f32, 16 bf16, 32 int8/fp8
    row_bytes = 2 * C * itemsize + 4 * C + C * itemsize    # z row + f32 eps row + out row
    target = max(align, (_TARGET_STEP_BYTES // max(row_bytes, 1)) // align * align)
    if T <= target:
        return T, 1, False                                 # whole-T block (full extent: always legal)
    for cand in range(target, align - 1, -align):          # largest aligned divisor <= target
        if T % cand == 0:
            return cand, T // cand, False
    # No aligned divisor (e.g. prime T): ceil-div grid + in-kernel edge masking.
    return target, int(pl.cdiv(T, target)), True


def _plan_slab(tT, C, itemsize):
    """Rows per in-kernel compute slab (bounds the f32 working set). Always divides tT."""
    align = max(8, 32 // max(itemsize, 1))
    cap = max(align, (_SLAB_F32_BYTES // (4 * max(C, 1))) // align * align)
    if tT <= cap:
        return tT
    for cand in range(cap, align - 1, -align):
        if tT % cand == 0:
            return cand
    return tT


def _sample_vae_kernel(z_ref, eps_ref, out_ref, kl_ref, *, c, slab, t_total, masked):
    """One (batch b, T-tile t) grid step: sample + per-tile KL partial."""
    tT = z_ref.shape[1]
    n_slab = tT // slab   # exact by construction

    def body(i, kl_acc):
        r0 = i * slab
        z = z_ref[0, pl.ds(r0, slab), :]                       # (slab, 2C), z.dtype
        mean = z[:, :c].astype(jnp.float32)                    # lane slice; free if C % 128 == 0
        logvar = jnp.clip(z[:, c:].astype(jnp.float32), -30.0, 20.0)
        std = jnp.exp(0.5 * logvar)
        var = std * std                                        # == exp(logvar): 1 EUP exp / element
        eps = eps_ref[0, pl.ds(r0, slab), :]                   # (slab, C), f32
        out_ref[0, pl.ds(r0, slab), :] = (mean + std * eps).astype(out_ref.dtype)

        kl_elem = mean * mean + var - logvar                   # "-1" hoisted out of the element loop
        if masked:
            # Ceil-div edge tile: rows >= t_total are padding; pad with 1.0 so they
            # contribute (1 - 1) == 0 to the hoisted sum below.
            row = lax.broadcasted_iota(jnp.int32, kl_elem.shape, 0)
            valid = (pl.program_id(1) * tT + r0 + row) < t_total
            kl_elem = jnp.where(valid, kl_elem, 1.0)
        return kl_acc + (jnp.sum(kl_elem) - jnp.float32(slab * c))

    kl = lax.fori_loop(0, n_slab, body, jnp.zeros((), jnp.float32))
    kl_ref[...] = jnp.broadcast_to(0.5 * kl, kl_ref.shape)


@jax.jit
def _sample_vae_impl(z, eps):
    B, T, twoC = z.shape
    C = twoC // 2
    itemsize = z.dtype.itemsize
    tT, n_t, masked = _plan_tiles(T, C, itemsize)
    slab = _plan_slab(tT, C, itemsize)

    kernel = partial(_sample_vae_kernel, c=C, slab=slab, t_total=T, masked=masked)

    bytes_accessed = (z.size * itemsize          # z read
                      + eps.size * 4             # eps read
                      + B * T * C * itemsize     # sample write
                      + B * n_t * 4)             # kl partials write
    cost = pl.CostEstimate(
        flops=int(8 * B * T * C),
        transcendentals=int(B * T * C),          # one exp per element
        bytes_accessed=int(bytes_accessed),
    )

    z_sampled, kl_parts = pl.pallas_call(
        kernel,
        out_shape=(
            jax.ShapeDtypeStruct((B, T, C), z.dtype),
            jax.ShapeDtypeStruct((B * n_t, 1, 1), jnp.float32),   # per-(b, t) KL partials
        ),
        grid_spec=pltpu.PrefetchScalarGridSpec(
            num_scalar_prefetch=0,
            grid=(B, n_t),
            in_specs=[
                pl.BlockSpec((1, tT, twoC), lambda b, t: (b, t, 0)),  # one contiguous z DMA
                pl.BlockSpec((1, tT, C), lambda b, t: (b, t, 0)),     # eps tile (f32)
            ],
            out_specs=[
                pl.BlockSpec((1, tT, C), lambda b, t: (b, t, 0)),
                pl.BlockSpec((1, 1, 1), lambda b, t: (b * n_t + t, 0, 0)),
            ],
        ),
        compiler_params=pltpu.CompilerParams(
            dimension_semantics=("parallel", "parallel"),   # no cross-step dependence at all
            vmem_limit_bytes=48 * 1024 * 1024,
        ),
        cost_estimate=cost,
    )(z, eps)

    kl_loss = jnp.sum(kl_parts) / B                 # torch.sum(kl) / kl.shape[0]
    return z_sampled, kl_loss


def sample_vae(z, seed=0):
    """Pallas implementation of SampleVAE.forward.

    Args:
      z:    (B, T, 2C) posterior parameters; first C of the last dim = mean,
            last C = logvar (== torch.chunk along dim=1 after the (0,2,1) permute).
      seed: int seed for the standard-normal noise (torch.randn equivalent).
    Returns:
      (z_sampled (B, T, C) in z.dtype, {'kl_loss': scalar float32})
    """
    B, T, twoC = z.shape
    C = twoC // 2
    eps = jax.random.normal(jax.random.PRNGKey(seed), (B, T, C), dtype=jnp.float32)
    z_sampled, kl_loss = _sample_vae_impl(z, eps)
    return z_sampled, {"kl_loss": kl_loss}


def _reference(z, eps):
    """Pure-JAX reference for SampleVAE.forward with an explicit eps stream."""
    zf = z.astype(jnp.float32)
    c = zf.shape[-1] // 2
    mean = zf[..., :c]
    logvar = jnp.clip(zf[..., c:], -30.0, 20.0)
    std = jnp.exp(0.5 * logvar)
    var = jnp.exp(logvar)
    sample = (mean + std * eps).astype(z.dtype)
    kl = 0.5 * jnp.sum(mean * mean + var - 1.0 - logvar, axis=(1, 2))
    return sample, jnp.sum(kl) / z.shape[0]


if __name__ == "__main__":
    B, T, C = 2, 8, 16                            # z: (batch=2, seq=8, 2*C=32)
    key = jax.random.PRNGKey(0)
    z = jax.random.normal(key, (B, T, 2 * C), dtype=jnp.float32).astype(jnp.bfloat16)

    z_sampled, aux = sample_vae(z, seed=0)
    jax.block_until_ready((z_sampled, aux["kl_loss"]))

    # Reference using the SAME eps stream the kernel consumed.
    eps = jax.random.normal(jax.random.PRNGKey(0), (B, T, C), dtype=jnp.float32)
    ref_sample, ref_kl = _reference(z, eps)

    # Shapes / dtypes.
    assert z_sampled.shape == (B, T, C) and z_sampled.dtype == z.dtype

    # KL is a deterministic function of z and must match the reference.
    assert jnp.allclose(aux["kl_loss"], ref_kl, rtol=2e-3, atol=1e-2), (
        float(aux["kl_loss"]), float(ref_kl))

    # Sample must match the reference given the same eps.
    assert jnp.allclose(z_sampled.astype(jnp.float32), ref_sample.astype(jnp.float32),
                        rtol=2e-2, atol=2e-2)

    # Same seed -> identical output; different seed -> different noise.
    z_again, aux_again = sample_vae(z, seed=0)
    assert jnp.array_equal(z_again, z_sampled)
    assert jnp.allclose(aux_again["kl_loss"], aux["kl_loss"])
    z_other, _ = sample_vae(z, seed=1234)
    assert not jnp.array_equal(z_other, z_sampled)

    # Reparameterization sanity: (sample - mean) / std ~ N(0, 1).
    mean_ref = z.astype(jnp.float32)[..., :C]
    std_ref = jnp.exp(0.5 * jnp.clip(z.astype(jnp.float32)[..., C:], -30.0, 20.0))
    resid = (z_sampled.astype(jnp.float32) - mean_ref) / std_ref
    assert bool(jnp.all(jnp.isfinite(resid)))
    assert abs(float(jnp.mean(resid))) < 0.35
    assert 0.65 < float(jnp.std(resid)) < 1.35

    print("KERNEL_OK")
</pallas_src>

<mosaic_0001>
module attributes {stable_mosaic.version = 11 : i64} {
  func.func @_sample_vae_kernel(%arg0: i32, %arg1: i32, %arg2: memref<1x8x32xbf16, #tpu.memory_space<vmem>>, %arg3: memref<1x8x16xf32, #tpu.memory_space<vmem>>, %arg4: memref<1x8x16xbf16, #tpu.memory_space<vmem>>, %arg5: memref<1x1x1xf32, #tpu.memory_space<vmem>>) attributes {dimension_semantics = [#tpu.dimension_semantics<parallel>, #tpu.dimension_semantics<parallel>], iteration_bounds = array<i64: 2, 1>, scalar_prefetch = 0 : i64, scratch_operands = 0 : i64, tpu.core_type = #tpu.core_type<tc>, window_params = [{transform_indices = @transform_0, window_bounds = array<i64: 1, 8, 32>}, {transform_indices = @transform_1, window_bounds = array<i64: 1, 8, 16>}, {transform_indices = @transform_2, window_bounds = array<i64: 1, 8, 16>}, {transform_indices = @transform_3, window_bounds = array<i64: 1, 1, 1>}]} {
    %cst = arith.constant 0.000000e+00 : f32
    %c0_i32 = arith.constant 0 : i32
    %c8_i32 = arith.constant 8 : i32
    %0 = arith.muli %c0_i32, %c8_i32 : i32
    %c0 = arith.constant 0 : index
    %1 = arith.index_cast %0 : i32 to index
    %c0_0 = arith.constant 0 : index
    %2 = vector.load %arg2[%c0, %1, %c0_0] : memref<1x8x32xbf16, #tpu.memory_space<vmem>>, vector<1x8x32xbf16>
    %3 = vector.shape_cast %2 : vector<1x8x32xbf16> to vector<8x32xbf16>
    %4 = vector.extract_strided_slice %3 {offsets = [0, 0], sizes = [8, 16], strides = [1, 1]} : vector<8x32xbf16> to vector<8x16xbf16>
    %5 = arith.extf %4 : vector<8x16xbf16> to vector<8x16xf32>
    %6 = vector.extract_strided_slice %3 {offsets = [0, 16], sizes = [8, 16], strides = [1, 1]} : vector<8x32xbf16> to vector<8x16xbf16>
    %7 = arith.extf %6 : vector<8x16xbf16> to vector<8x16xf32>
    %cst_1 = arith.constant -3.000000e+01 : f32
    %cst_2 = arith.constant 2.000000e+01 : f32
    %8 = vector.broadcast %cst_1 : f32 to vector<8x16xf32>
    %9 = arith.maximumf %8, %7 : vector<8x16xf32>
    %10 = vector.broadcast %cst_2 : f32 to vector<8x16xf32>
    %11 = arith.minimumf %10, %9 : vector<8x16xf32>
    %cst_3 = arith.constant 5.000000e-01 : f32
    %12 = vector.broadcast %cst_3 : f32 to vector<8x16xf32>
    %13 = arith.mulf %12, %11 : vector<8x16xf32>
    %14 = math.exp %13 : vector<8x16xf32>
    %15 = arith.mulf %14, %14 : vector<8x16xf32>
    %c0_4 = arith.constant 0 : index
    %16 = arith.index_cast %0 : i32 to index
    %c0_5 = arith.constant 0 : index
    %17 = vector.load %arg3[%c0_4, %16, %c0_5] : memref<1x8x16xf32, #tpu.memory_space<vmem>>, vector<1x8x16xf32>
    %18 = vector.shape_cast %17 : vector<1x8x16xf32> to vector<8x16xf32>
    %19 = arith.mulf %14, %18 : vector<8x16xf32>
    %20 = arith.addf %5, %19 : vector<8x16xf32>
    %21 = arith.truncf %20 : vector<8x16xf32> to vector<8x16xbf16>
    %c0_6 = arith.constant 0 : index
    %22 = arith.index_cast %0 : i32 to index
    %c0_7 = arith.constant 0 : index
    %23 = vector.load %arg4[%c0_6, %22, %c0_7] : memref<1x8x16xbf16, #tpu.memory_space<vmem>>, vector<1x8x16xbf16>
    %24 = vector.shape_cast %23 : vector<1x8x16xbf16> to vector<8x16xbf16>
    %25 = vector.shape_cast %21 : vector<8x16xbf16> to vector<1x8x16xbf16>
    tpu.vector_store %arg4[%c0_6, %22, %c0_7], %25 {strides = array<i32>} : memref<1x8x16xbf16, #tpu.memory_space<vmem>>, vector<1x8x16xbf16>,
    %26 = arith.mulf %5, %5 : vector<8x16xf32>
    %27 = arith.addf %26, %15 : vector<8x16xf32>
    %28 = arith.subf %27, %11 : vector<8x16xf32>
    %29 = vector.shape_cast %28 : vector<8x16xf32> to vector<1x8x16xf32>
    %cst_8 = arith.constant dense<0.000000e+00> : vector<1xf32>
    %30 = vector.multi_reduction <add>, %29, %cst_8 [1, 2] : vector<1x8x16xf32> to vector<1xf32>
    %31 = vector.shape_cast %30 : vector<1xf32> to vector<1x1x1xf32>
    %32 = vector.extract %31[0, 0, 0] : f32 from vector<1x1x1xf32>
    %cst_9 = arith.constant 1.280000e+02 : f32
    %33 = arith.subf %32, %cst_9 : f32
    %34 = arith.addf %cst, %33 : f32
    %c1_i32 = arith.constant 1 : i32
    %cst_10 = arith.constant 5.000000e-01 : f32
    %35 = arith.mulf %cst_10, %34 : f32
    %36 = vector.broadcast %35 : f32 to vector<1x1x1xf32>
    %c0_11 = arith.constant 0 : index
    %c0_12 = arith.constant 0 : index
    %c0_13 = arith.constant 0 : index
    %37 = vector.load %arg5[%c0_11, %c0_12, %c0_13] : memref<1x1x1xf32, #tpu.memory_space<vmem>>, vector<1x1x1xf32>
    tpu.vector_store %arg5[%c0_11, %c0_12, %c0_13], %36 {strides = array<i32>} : memref<1x1x1xf32, #tpu.memory_space<vmem>>, vector<1x1x1xf32>,
    return
  }
  func.func @transform_0(%arg0: i32, %arg1: i32) -> (i32, i32, i32) {
    %c0_i32 = arith.constant 0 : i32
    %c0_i32_0 = arith.constant 0 : i32
    return %arg0, %arg1, %c0_i32 : i32, i32, i32
  }
  func.func @transform_1(%arg0: i32, %arg1: i32) -> (i32, i32, i32) {
    %c0_i32 = arith.constant 0 : i32
    %c0_i32_0 = arith.constant 0 : i32
    return %arg0, %arg1, %c0_i32 : i32, i32, i32
  }
  func.func @transform_2(%arg0: i32, %arg1: i32) -> (i32, i32, i32) {
    %c0_i32 = arith.constant 0 : i32
    %c0_i32_0 = arith.constant 0 : i32
    return %arg0, %arg1, %c0_i32 : i32, i32, i32
  }
  func.func @transform_3(%arg0: i32, %arg1: i32) -> (i32, i32, i32) {
    %c1_i32 = arith.constant 1 : i32
    %0 = arith.muli %arg0, %c1_i32 : i32
    %1 = arith.addi %0, %arg1 : i32
    %c0_i32 = arith.constant 0 : i32
    %c0_i32_0 = arith.constant 0 : i32
    %c0_i32_1 = arith.constant 0 : i32
    return %1, %c0_i32, %c0_i32_0 : i32, i32, i32
  }
}

</mosaic_0001>

<llo_original>
// kernel: _sample_vae_impl.1
$region0: #{_sample_vae_impl.1}
  #allocation0 [shape = 'u32[]', space=smem, size = 0x4, offset = 0x4, fixed_abs, tag = 'smem constant byte address 0x4 - core index']
  #allocation1 [shape = 'u32[144,128]{1,0:T(1,128)}', space=vmem, size = 0x12000, scoped, tag = 'internal scratch']
  %s0 = inlined_call_operand.hbm [shape: bf16[2,8,32], index: 0, kind: input, shape index: {}]
  %s1 = inlined_call_operand.hbm [shape: f32[2,8,16], index: 1, kind: input, shape index: {}]
  %s2 = inlined_call_operand.hbm [shape: bf16[2,8,16], index: 2, kind: output, shape index: {0}]
  %s3 = inlined_call_operand.vmem [shape: f32[2,1,1], index: 3, kind: output, shape index: {1}]
  %4 = xla_tuple %s2, %s3
  %s5 = sld [smem:[#allocation0]]
  $region57: #{_sample_vae_impl.1} parent=0
    _
  %s7 = ssub.s32 1, %s5
  %s8 = scalar_select 0, %s7, %s5
  $region1: #{_sample_vae_impl.1} parent=0
    #allocation2 [shape = 'u8[4096]{0}', space=vmem, size = 0x1000, scoped, tag = 'input window, operand 0']
    #allocation3 [shape = 's32[2]{0}', space=sflag, size = 0x8, scoped, tag = 'scoped memory for _sample_vae_impl.1']
    #allocation4 [shape = 's32[2]{0}', space=sflag, size = 0x8, scoped, tag = 'scoped memory for _sample_vae_impl.1']
    #allocation5 [shape = 'u8[8192]{0}', space=vmem, size = 0x2000, scoped, tag = 'input window, operand 1']
    #allocation6 [shape = 's32[2]{0}', space=sflag, size = 0x8, scoped, tag = 'scoped memory for _sample_vae_impl.1']
    #allocation7 [shape = 'u8[4096]{0}', space=vmem, size = 0x1000, scoped, tag = 'output window, operand 0']
    %9 = vsyncpa [#allocation3], 0
    %s10 = scalar_lea.sflag [#allocation3], 1
    %11 = vsyncpa %s10, 0
    %12 = vsyncpa [#allocation6], 0
    %s13 = scalar_lea.sflag [#allocation6], 1
    %14 = vsyncpa %s13, 0
    %15 = vsyncpa [#allocation4], 0
    %s16 = scalar_lea.sflag [#allocation4], 1
    %17 = vsyncpa %s16, 0
    loop: start=0, step=1, limit=4
    $region2: #{_sample_vae_impl.1} parent=1 // loop_pre_header
      _
    $region3: #{_sample_vae_impl.1} parent=1 // loop_header
      %s19 = sphi 0, %s23
      %p20 = scmp.ge.s32.totalorder %s19, 4
      %s26 = sphi 0, %s38
      %s27 = sphi 0, %s34
      %s28 = sphi 0, %s26
      %s29 = sphi 0, %s27
      %s30 = sphi 0, %s28
      %s31 = sphi 0, %s29
      %s43 = sphi 0, %s45
      %s46 = sphi 0, %s43
      %s47 = sphi 0, %s46
      %s63 = sphi 0, %s47
      %s71 = sphi 0, %s73
      %s74 = sphi 0, %s71
      %s75 = sphi 0, %s74
      %s91 = sphi 0, %s75
      %s99 = sphi 0, %s101
      %s102 = sphi 0, %s99
      %s103 = sphi 0, %s102
      %s119 = sphi 0, %s103
      %s127 = sphi 0, %s129
      %s130 = sphi 0, %s127
      %s131 = sphi 0, %s130
      %s147 = sphi 0, %s131
    $region4: #{_sample_vae_impl.1} parent=1 // loop_header_branch
      %22 = sbr.rel (%p20) target = $region8
    $region5: #{_sample_vae_impl.1} parent=1 // loop_body
      %s24 = ssub.s32 %s19, 1
      %s25 = ssub.s32 %s19, 2
      %s32 = sadd.s32 1, %s27
      %p33 = scmp.ge.s32.totalorder %s32, 1
      %s34 = scalar_select %p33, 0, %s32
      %s35 = sadd.s32 1, %s26
      %s36 = scalar_select %p33, %s35, %s26
      %p37 = scmp.ge.s32.totalorder %s36, 2
      %s38 = scalar_select %p37, 0, %s36
      %s39 = ssub.s32 %s26, %s38
      %s40 = ssub.s32 %s27, %s34
      %s41 = sor.u32 %s39, %s40
      %p42 = scmp.eq.s32.totalorder %s41, 0
      %s44 = sadd.s32 %s43, 1
      %s45 = scalar_select %p42, %s43, %s44
      %p48 = pneg %p42
      %p49 = scmp.eq.s32.totalorder %s19, 1
      %p50 = por %p48, %p49
      %p51 = scmp.ne.s32.totalorder %s43, %s46
      %p52 = scmp.eq.s32.totalorder %s19, 0
      %p53 = por %p51, %p52
      %p54 = scmp.ne.s32.totalorder %s43, %s46
      %p55 = scmp.eq.s32.totalorder %s24, 1
      %p56 = por %p54, %p55
      %p57 = scmp.ne.s32.totalorder %s46, %s47
      %p58 = scmp.eq.s32.totalorder %s24, 0
      %p59 = por %p57, %p58
      %p60 = scmp.ne.s32.totalorder %s46, %s47
      %p61 = scmp.eq.s32.totalorder %s25, 1
      %p62 = por %p60, %p61
      %p64 = scmp.ne.s32.totalorder %s47, %s63
      %p65 = scmp.eq.s32.totalorder %s25, 0
      %p66 = por %p64, %p65
      %s67 = ssub.s32 %s26, %s38
      %s68 = ssub.s32 %s27, %s34
      %s69 = sor.u32 %s67, %s68
      %p70 = scmp.eq.s32.totalorder %s69, 0
      %s72 = sadd.s32 %s71, 1
      %s73 = scalar_select %p70, %s71, %s72
      %p76 = pneg %p70
      %p77 = scmp.eq.s32.totalorder %s19, 1
      %p78 = por %p76, %p77
      %p79 = scmp.ne.s32.totalorder %s71, %s74
      %p80 = scmp.eq.s32.totalorder %s19, 0
      %p81 = por %p79, %p80
      %p82 = scmp.ne.s32.totalorder %s71, %s74
      %p83 = scmp.eq.s32.totalorder %s24, 1
      %p84 = por %p82, %p83
      %p85 = scmp.ne.s32.totalorder %s74, %s75
      %p86 = scmp.eq.s32.totalorder %s24, 0
      %p87 = por %p85, %p86
      %p88 = scmp.ne.s32.totalorder %s74, %s75
      %p89 = scmp.eq.s32.totalorder %s25, 1
      %p90 = por %p88, %p89
      %p92 = scmp.ne.s32.totalorder %s75, %s91
      %p93 = scmp.eq.s32.totalorder %s25, 0
      %p94 = por %p92, %p93
      %s95 = ssub.s32 %s26, %s38
      %s96 = ssub.s32 %s27, %s34
      %s97 = sor.u32 %s95, %s96
      %p98 = scmp.eq.s32.totalorder %s97, 0
      %s100 = sadd.s32 %s99, 1
      %s101 = scalar_select %p98, %s99, %s100
      %p104 = pneg %p98
      %p105 = scmp.eq.s32.totalorder %s19, 1
      %p106 = por %p104, %p105
      %p107 = scmp.ne.s32.totalorder %s99, %s102
      %p108 = scmp.eq.s32.totalorder %s19, 0
      %p109 = por %p107, %p108
      %p110 = scmp.ne.s32.totalorder %s99, %s102
      %p111 = scmp.eq.s32.totalorder %s24, 1
      %p112 = por %p110, %p111
      %p113 = scmp.ne.s32.totalorder %s102, %s103
      %p114 = scmp.eq.s32.totalorder %s24, 0
      %p115 = por %p113, %p114
      %p116 = scmp.ne.s32.totalorder %s102, %s103
      %p117 = scmp.eq.s32.totalorder %s25, 1
      %p118 = por %p116, %p117
      %p120 = scmp.ne.s32.totalorder %s103, %s119
      %p121 = scmp.eq.s32.totalorder %s25, 0
      %p122 = por %p120, %p121
      %s123 = sadd.s32 %s26, %s27
      %s124 = sadd.s32 %s38, %s34
      %s125 = ssub.s32 %s123, %s124
      %p126 = scmp.eq.s32.totalorder %s125, 0
      %s128 = sadd.s32 %s127, 1
      %s129 = scalar_select %p126, %s127, %s128
      %p132 = pneg %p126
      %p133 = scmp.eq.s32.totalorder %s19, 1
      %p134 = por %p132, %p133
      %p135 = scmp.ne.s32.totalorder %s127, %s130
      %p136 = scmp.eq.s32.totalorder %s19, 0
      %p137 = por %p135, %p136
      %p138 = scmp.ne.s32.totalorder %s127, %s130
      %p139 = scmp.eq.s32.totalorder %s24, 1
      %p140 = por %p138, %p139
      %p141 = scmp.ne.s32.totalorder %s130, %s131
      %p142 = scmp.eq.s32.totalorder %s24, 0
      %p143 = por %p141, %p142
      %p144 = scmp.ne.s32.totalorder %s130, %s131
      %p145 = scmp.eq.s32.totalorder %s25, 1
      %p146 = por %p144, %p145
      %p148 = scmp.ne.s32.totalorder %s131, %s147
      %p149 = scmp.eq.s32.totalorder %s25, 0
      %p150 = por %p148, %p149
      %p151 = scmp.le.s32.totalorder 1, %s19
      %p152 = scmp.lt.s32.totalorder %s19, 3
      %p153 = pnand %p151, %p152
      %p154 = pneg %p153
      // Predicated region
      $region9: #{_sample_vae_impl.1} parent=5 // pred_check
        _
      $region10: #{_sample_vae_impl.1} parent=5 // pred_check_branch
        %156 = sbr.rel (%p153) target = $region12
      $region11: #{_sample_vae_impl.1} parent=5 // pred_region
        %s157 = ssub.s32 %s19, 1
      $region12: #{_sample_vae_impl.1} parent=5 // pred_fallthru
        _
      %p158 = scmp.lt.s32.totalorder %s19, 2
      // Predicated region
      $region13: #{_sample_vae_impl.1} parent=5 // pred_check
        %p159 = pneg %p158
      $region14: #{_sample_vae_impl.1} parent=5 // pred_check_branch
        %161 = sbr.rel (%p159) target = $region16
      $region15: #{_sample_vae_impl.1} parent=5 // pred_region
        // Predicated region
        $region17: #{_sample_vae_impl.1} parent=15 // pred_check
          %p162 = pneg %p53
        $region18: #{_sample_vae_impl.1} parent=15 // pred_check_branch
          %164 = sbr.rel (%p162) target = $region20
        $region19: #{_sample_vae_impl.1} parent=15 // pred_region
          %s165 = sand.u32 %s43, 1
          %s166 = scalar_lea.sflag [#allocation3], %s165
          %s167 = sand.u32 %s43, 1
          %s168 = smul.addr %s167, 4
          %s169 = scalar_lea.vmem [#allocation2], %s168
          %s171 = ssub.s32 64, 64
          %172 = vsyncadd %s166, %s171
          %s173 = sadd.s32 %s27, %s26
          %s174 = smul.addr %s173, 64
          %s175 = scalar_lea.hbm %s0, %s174
          %s177 = sshll.u32 %s169, 4
          %s178 = int_to_ptr.vmem [resolvable:$true] %s177
          %180 = dma.hbm_to_vmem [thread:$0]  %s175, 64, %s178, %s166
        $region20: #{_sample_vae_impl.1} parent=15 // pred_fallthru
          _
        // Predicated region
        $region21: #{_sample_vae_impl.1} parent=15 // pred_check
          %p181 = pneg %p81
        $region22: #{_sample_vae_impl.1} parent=15 // pred_check_branch
          %183 = sbr.rel (%p181) target = $region24
        $region23: #{_sample_vae_impl.1} parent=15 // pred_region
          %s184 = sand.u32 %s71, 1
          %s185 = scalar_lea.sflag [#allocation6], %s184
          %s186 = sand.u32 %s71, 1
          %s187 = smul.addr %s186, 8
          %s188 = scalar_lea.vmem [#allocation5], %s187
          %s190 = ssub.s32 128, 128
          %191 = vsyncadd %s185, %s190
          %s192 = sadd.s32 %s27, %s26
          %s193 = smul.addr %s192, 128
          %s194 = scalar_lea.hbm %s1, %s193
          %s196 = sshll.u32 %s188, 4
          %s197 = int_to_ptr.vmem [resolvable:$true] %s196
          %199 = dma.hbm_to_vmem [thread:$0]  %s194, 128, %s197, %s185
        $region24: #{_sample_vae_impl.1} parent=15 // pred_fallthru
          _
      $region16: #{_sample_vae_impl.1} parent=5 // pred_fallthru
        _
      %p200 = scmp.le.s32.totalorder 1, %s19
      %p201 = scmp.lt.s32.totalorder %s19, 3
      %p202 = pnand %p200, %p201
      %p203 = pneg %p202
      // Predicated region
      $region25: #{_sample_vae_impl.1} parent=5 // pred_check
        _
      $region26: #{_sample_vae_impl.1} parent=5 // pred_check_branch
        %205 = sbr.rel (%p202) target = $region28
      $region27: #{_sample_vae_impl.1} parent=5 // pred_region
        %s206 = ssub.s32 %s19, 1
        %s207 = sand.u32 %s46, 1
        %s208 = scalar_lea.sflag [#allocation3], %s207
        %s209 = sand.u32 %s46, 1
        %s210 = smul.addr %s209, 4
        %s211 = scalar_lea.vmem [#allocation2], %s210
        // Predicated region
        $region29: #{_sample_vae_impl.1} parent=27 // pred_check
          %p212 = pneg %p59
        $region30: #{_sample_vae_impl.1} parent=27 // pred_check_branch
          %214 = sbr.rel (%p212) target = $region32
        $region31: #{_sample_vae_impl.1} parent=27 // pred_region
          %215 = dma.done %s208, 64
        $region32: #{_sample_vae_impl.1} parent=27 // pred_fallthru
          _
        %s216 = sand.u32 %s74, 1
        %s217 = scalar_lea.sflag [#allocation6], %s216
        %s218 = sand.u32 %s74, 1
        %s219 = smul.addr %s218, 8
        %s220 = scalar_lea.vmem [#allocation5], %s219
        // Predicated region
        $region33: #{_sample_vae_impl.1} parent=27 // pred_check
          %p221 = pneg %p87
        $region34: #{_sample_vae_impl.1} parent=27 // pred_check_branch
          %223 = sbr.rel (%p221) target = $region36
        $region35: #{_sample_vae_impl.1} parent=27 // pred_region
          %224 = dma.done %s217, 128
        $region36: #{_sample_vae_impl.1} parent=27 // pred_fallthru
          _
        %s225 = sand.u32 %s46, 1
        %s226 = scalar_lea.sflag [#allocation3], %s225
        %s227 = sand.u32 %s46, 1
        %s228 = smul.addr %s227, 4
        %s229 = scalar_lea.vmem [#allocation2], %s228
        %p230 = pneg %p59
        %p231 = pneg %p56
        %s232 = sand.u32 %s74, 1
        %s233 = scalar_lea.sflag [#allocation6], %s232
        %s234 = sand.u32 %s74, 1
        %s235 = smul.addr %s234, 8
        %s236 = scalar_lea.vmem [#allocation5], %s235
        %p237 = pneg %p87
        %p238 = pneg %p84
        %p239 = pneg %p115
        %p240 = pneg %p112
        %s241 = sand.u32 %s102, 1
        %s242 = scalar_lea.sflag [#allocation4], %s241
        %s243 = sand.u32 %s102, 1
        %s244 = smul.addr %s243, 4
        %s245 = scalar_lea.vmem [#allocation7], %s244
        %p246 = pneg %p143
        %p247 = pneg %p140
        %s248 = sadd.s32 %s28, %s29
        %p249 = scmp.lt.s32.totalorder %s248, 1
        %s250 = scalar_select %p249, %s248, 1
        %s251 = scalar_lea.vmem %s3, %s250
        %s252 = sadd.s32 %s28, %s29
        %p253 = scmp.lt.s32.totalorder %s252, 1
        %s254 = scalar_select %p253, %s252, 1
        %s255 = scalar_lea.vmem %s3, %s254
        %s256 = sadd.s32 %s28, %s29
        %v257 = vld [vmem:[%s211] sm:$0xf]
        %v258 = vunpack.c.l.bf16 %v257
        %v259 = vmax.f32 %v258, -30.0
        %v260 = vmin.f32 %v259, 20.0
        %v261 = vmul.f32 %v260, 0.5
        %v262 = vmul.f32 %v261, 1.442695
        %v263 = vpow.pop %v262
        %v264 = vmul.f32 %v263, %v263
        %v265 = vld [vmem:[%s220] sm:$0xff]
        %267 = vrot.lane.b32.xlu0 %v265, 16
        %v268 = vpop.permute.xlu0 %267
        %v270 = vmul.f32 %v263, %v268
        %272 = vrot.lane.b32.xlu0 %v270, 112
        %v273 = vpop.permute.xlu0 %272
        %v275 = vadd.f32 %v258, %v273
        %v276 = vpack.c.bf16 %v275, %v275
        %vm277 = vcmask 125952
        %278 = vst.msk [vmem:[%s245] sm:$0xf] %vm277, %v276
        %v279 = vmul.f32 %v258, %v258
        %281 = vrot.lane.b32.xlu0 %v264, 112
        %v282 = vpop.permute.xlu0 %281
        %v284 = vadd.f32 %v279, %v282
        %286 = vrot.lane.b32.xlu0 %v260, 112
        %v287 = vpop.permute.xlu0 %286
        %v289 = vsub.f32 %v284, %v287
        %vm290 = vcmask 130048
        %v291 = vsel %vm290, %v289, 0.0
        %292 = vadd.xlane.f32.xlu0 %v291
        %v293 = vpop.xlane.xlu0 %292
        %v294 = vrot.slane %v293, 4
        %v295 = vadd.f32 %v293, %v294
        %v296 = vrot.slane %v295, 2
        %v297 = vadd.f32 %v295, %v296
        %v298 = vrot.slane %v297, 1
        %v299 = vadd.f32 %v297, %v298
        %s300 = vtos %v299
        %s301 = ssub.f32 %s300, 128.0
        %s302 = sadd.f32 %s301, 0.0
        %s303 = smul.f32 %s302, 0.5
        %v304 = vstv %s303
        %vm305 = vcmask 0
        %306 = vst.msk [vmem:[%s255] sm:$0x1] %vm305, %v304
        %s307 = sand.u32 %s102, 1
        %s308 = scalar_lea.sflag [#allocation4], %s307
        %s309 = sand.u32 %s102, 1
        %s310 = smul.addr %s309, 4
        %s311 = scalar_lea.vmem [#allocation7], %s310
        %s312 = sadd.s32 %s28, %s29
        %p313 = scmp.lt.s32.totalorder %s312, 1
        %s314 = scalar_select %p313, %s312, 1
        %s315 = scalar_lea.vmem %s3, %s314
        // Predicated region
        $region37: #{_sample_vae_impl.1} parent=27 // pred_check
          %p316 = pneg %p112
        $region38: #{_sample_vae_impl.1} parent=27 // pred_check_branch
          %318 = sbr.rel (%p316) target = $region40
        $region39: #{_sample_vae_impl.1} parent=27 // pred_region
          %s320 = ssub.s32 64, 64
          %321 = vsyncadd %s308, %s320
          %s322 = sadd.s32 %s29, %s28
          %s323 = smul.addr %s322, 64
          %s324 = scalar_lea.hbm %s2, %s323
          %s326 = sshll.u32 %s311, 4
          %s327 = int_to_ptr.vmem [resolvable:$true] %s326
          %329 = dma.vmem_to_hbm [thread:$0]  %s327, 64, %s324, %s308
        $region40: #{_sample_vae_impl.1} parent=27 // pred_fallthru
          _
        // Predicated region
        $region41: #{_sample_vae_impl.1} parent=27 // pred_check
          %p330 = pneg %p140
        $region42: #{_sample_vae_impl.1} parent=27 // pred_check_branch
          %332 = sbr.rel (%p330) target = $region44
        $region43: #{_sample_vae_impl.1} parent=27 // pred_region
          %s333 = sadd.s32 %s28, %s29
        $region44: #{_sample_vae_impl.1} parent=27 // pred_fallthru
          _
      $region28: #{_sample_vae_impl.1} parent=5 // pred_fallthru
        _
      %p334 = scmp.le.s32.totalorder 2, %s19
      // Predicated region
      $region45: #{_sample_vae_impl.1} parent=5 // pred_check
        %p335 = pneg %p334
      $region46: #{_sample_vae_impl.1} parent=5 // pred_check_branch
        %337 = sbr.rel (%p335) target = $region48
      $region47: #{_sample_vae_impl.1} parent=5 // pred_region
        %s338 = ssub.s32 %s19, 2
        // Predicated region
        $region49: #{_sample_vae_impl.1} parent=47 // pred_check
          %p339 = pneg %p118
        $region50: #{_sample_vae_impl.1} parent=47 // pred_check_branch
          %341 = sbr.rel (%p339) target = $region52
        $region51: #{_sample_vae_impl.1} parent=47 // pred_region
          %s342 = sand.u32 %s103, 1
          %s343 = scalar_lea.sflag [#allocation4], %s342
          %s344 = sand.u32 %s103, 1
          %s345 = smul.addr %s344, 4
          %s346 = scalar_lea.vmem [#allocation7], %s345
          %347 = dma.done %s343, 64
        $region52: #{_sample_vae_impl.1} parent=47 // pred_fallthru
          _
        // Predicated region
        $region53: #{_sample_vae_impl.1} parent=47 // pred_check
          %p348 = pneg %p146
        $region54: #{_sample_vae_impl.1} parent=47 // pred_check_branch
          %350 = sbr.rel (%p348) target = $region56
        $region55: #{_sample_vae_impl.1} parent=47 // pred_region
          %s351 = sadd.s32 %s30, %s31
          %p352 = scmp.lt.s32.totalorder %s351, 1
          %s353 = scalar_select %p352, %s351, 1
          %s354 = scalar_lea.vmem %s3, %s353
        $region56: #{_sample_vae_impl.1} parent=47 // pred_fallthru
          _
      $region48: #{_sample_vae_impl.1} parent=5 // pred_fallthru
        _
    $region6: #{_sample_vae_impl.1} parent=1 // loop_footer
      %s23 = sadd.s32 1, %s19
    $region7: #{_sample_vae_impl.1} parent=1 // loop_footer_branch
      %18 = sbr.rel target = $region3
    $region8: #{_sample_vae_impl.1} parent=1 // loop_exit
      _
    %355 = vsyncpa [#allocation3], 1
    %s356 = scalar_lea.sflag [#allocation3], 1
    %357 = vsyncpa %s356, 1
    %358 = vsyncpa [#allocation6], 1
    %s359 = scalar_lea.sflag [#allocation6], 1
    %360 = vsyncpa %s359, 1
    %361 = vsyncpa [#allocation4], 1
    %s362 = scalar_lea.sflag [#allocation4], 1
    %363 = vsyncpa %s362, 1

</llo_original>
